<compile_context>
chip_gen: v5e
topology: v5e:2x2
jax: 0.10.0
libtpu: 0.0.40
codegen_flags: <defaults>
</compile_context>

<pallas_src>
import jax
import jax.numpy as jnp
from jax.experimental import pallas as pl
from jax.experimental.pallas import tpu as pltpu


def _round_up(v, m):
    return (v + m - 1) // m * m


def _min_sublane(dtype):
    itemsize = int(jnp.dtype(dtype).itemsize)
    return {4: 8, 2: 16, 1: 32}.get(itemsize, 8)


def _vmem_capacity_bytes():
    try:
        info = pltpu.get_tpu_info()
        cap = getattr(info, "vmem_capacity_bytes", None)
        if cap:
            return int(cap)
    except Exception:
        pass
    return 64 << 20  # conservative fallback: v7x per-TensorCore VMEM


def _pick_seq_tile(T, dtype, max_tile, min_grid_t=1):
    """Largest power-of-two tile <= max_tile that divides T, is a multiple of
    the dtype's sublane pack and (if possible) leaves >= min_grid_t steps."""
    min_sub = _min_sublane(dtype)
    cands = [c for c in (1024, 512, 256, 128, 64, 32, 16, 8)
             if min_sub <= c <= max_tile and T % c == 0]
    for c in cands:
        if T // c >= min_grid_t:
            return c
    if cands:
        return cands[0]
    return T  # full-extent block (only if no legal tile divides T)


def last_layer_kernel(x_ref, w_ref, c_ref, out_ref):
    # x_ref: (1, tT, H) tile of one batch element.
    # w_ref: (1, H, O_pad) adaLN-folded projection weight for this batch elem.
    # c_ref: (1, 1, O_pad) folded bias (shift @ w_lin + b_lin), f32.
    xb = x_ref[0].astype(jnp.float32)                       # (tT, H)
    h = xb.shape[-1]
    inv_h = 1.0 / h
    ones_col = jnp.ones((h, 1), dtype=jnp.float32)

    # LayerNorm (no affine), eps=1e-6.  Both cross-lane reductions run on the
    # MXU (huge slack here) instead of VALU/XLU; centered form for stability.
    mean = jnp.dot(xb, ones_col, preferred_element_type=jnp.float32) * inv_h
    xc = xb - mean                                           # (tT, H)
    var = jnp.dot(xc * xc, ones_col, preferred_element_type=jnp.float32) * inv_h
    normed = xc * jax.lax.rsqrt(var + 1e-6)                  # (tT, H)

    # Projection with modulation pre-folded:
    #   out = normed @ ((1+scale) * w_lin) + (shift @ w_lin + b_lin)
    w = w_ref[0]                                             # (H, O_pad)
    out = jnp.dot(normed.astype(w.dtype), w,
                  preferred_element_type=jnp.float32)        # (tT, O_pad)
    out = out + c_ref[0]                                     # broadcast (1, O_pad)
    out_ref[0] = out.astype(out_ref.dtype)


def last_layer_forward(x, vec, w_mod, b_mod, w_lin, b_lin):
    """x: (B, T, H); vec: (B, H); w_mod: (H, 2H); b_mod: (2H,);
       w_lin: (H, O); b_lin: (O,)   ->  (B, T, O)

    Pass x / w_lin in the model's storage dtype (bf16 in production). LN
    statistics and matmul accumulation stay in f32 inside the kernel."""
    B, T, H = x.shape
    O = w_lin.shape[1]
    out_dtype = x.dtype

    # --- adaLN modulation: tiny M=1 GEMV in the wrapper, then folded into the
    #     projection weight/bias so the kernel never touches shift/scale. ----
    v32 = vec.astype(jnp.float32)
    sv = v32 * jax.nn.sigmoid(v32)                                     # SiLU
    mod = sv @ w_mod.astype(jnp.float32) + b_mod.astype(jnp.float32)   # (B, 2H)
    shift, scale = mod[:, :H], mod[:, H:]

    w32 = w_lin.astype(jnp.float32)
    O_pad = _round_up(O, 128)                                          # lane-dense out
    w_fold = (1.0 + scale)[:, :, None] * w32[None, :, :]               # (B, H, O)
    c_fold = shift @ w32 + b_lin.astype(jnp.float32)                   # (B, O)
    if O_pad != O:
        w_fold = jnp.pad(w_fold, ((0, 0), (0, 0), (0, O_pad - O)))
        c_fold = jnp.pad(c_fold, ((0, 0), (0, O_pad - O)))
    w_fold = w_fold.astype(w_lin.dtype)                                # MXU feed dtype
    c_fold = c_fold[:, None, :]                                        # (B, 1, O_pad) f32

    # --- sequence padding / dtype-aware tiling -------------------------------
    min_sub = _min_sublane(x.dtype)
    T_pad = _round_up(T, min_sub)
    if T_pad != T:
        x = jnp.pad(x, ((0, 0), (0, T_pad - T), (0, 0)))

    vmem_cap = _vmem_capacity_bytes()
    max_tile = 1024 if vmem_cap >= (96 << 20) else 256   # v5e/v6e vs v7x
    min_grid_t = 2 if B == 1 else 1                      # keep both v7x TCs busy
    tT = _pick_seq_tile(T_pad, x.dtype, max_tile, min_grid_t)
    grid = (B, T_pad // tT)

    # --- honest VMEM estimate -------------------------------------------------
    x_bytes = jnp.dtype(x.dtype).itemsize
    w_bytes = jnp.dtype(w_fold.dtype).itemsize
    o_bytes = jnp.dtype(out_dtype).itemsize
    vmem_need = (
        2 * tT * H * x_bytes              # double-buffered x tile
        + 2 * tT * O_pad * o_bytes        # double-buffered output tile
        + 2 * H * O_pad * w_bytes         # double-buffered per-batch weight
        + 2 * O_pad * 4                   # folded bias
        + 3 * tT * H * 4                  # live f32 intermediates (xb, xc, normed)
        + (2 << 20))                      # headroom
    hard_cap = min(int(vmem_cap * 0.8), 100 << 20)
    vmem_limit = int(min(max(vmem_need + vmem_need // 2, 32 << 20), hard_cap))

    cost = pl.CostEstimate(
        flops=2 * B * T_pad * H * (O_pad + 2),
        transcendentals=B * T_pad,                         # rsqrt per row
        bytes_accessed=(B * T_pad * H * x_bytes
                        + B * T_pad * O_pad * o_bytes
                        + B * H * O_pad * w_bytes),
    )

    out_padded = pl.pallas_call(
        last_layer_kernel,
        out_shape=jax.ShapeDtypeStruct((B, T_pad, O_pad), out_dtype),
        grid_spec=pltpu.PrefetchScalarGridSpec(
            num_scalar_prefetch=0,
            grid=grid,
            in_specs=[
                pl.BlockSpec((1, tT, H), lambda b, t: (b, t, 0)),     # x tile
                pl.BlockSpec((1, H, O_pad), lambda b, t: (b, 0, 0)),  # folded W_b
                pl.BlockSpec((1, 1, O_pad), lambda b, t: (b, 0, 0)),  # folded c_b
            ],
            out_specs=pl.BlockSpec((1, tT, O_pad), lambda b, t: (b, t, 0)),
        ),
        compiler_params=pltpu.CompilerParams(
            dimension_semantics=("parallel", "parallel"),
            vmem_limit_bytes=vmem_limit,
        ),
        cost_estimate=cost,
    )(x, w_fold, c_fold)

    out = out_padded
    if T_pad != T:
        out = out[:, :T, :]
    if O_pad != O:
        out = out[..., :O]
    return out


def reference_forward(x, vec, w_mod, b_mod, w_lin, b_lin):
    v = vec[:, None, :]
    sv = v * jax.nn.sigmoid(v)
    mod = sv @ w_mod + b_mod
    H = x.shape[-1]
    shift, scale = mod[..., :H], mod[..., H:]
    mean = jnp.mean(x, axis=-1, keepdims=True)
    var = jnp.mean(jnp.square(x - mean), axis=-1, keepdims=True)
    normed = (x - mean) * jax.lax.rsqrt(var + 1e-6)
    y = normed * (1.0 + scale) + shift
    return y @ w_lin + b_lin


if __name__ == "__main__":
    # Small shapes consistent with the module.
    B, T, H = 2, 8, 32
    patch_size, out_channels = 2, 4
    O = patch_size * patch_size * out_channels       # 16

    key = jax.random.PRNGKey(0)
    kx, kv, k1, k2, k3, k4 = jax.random.split(key, 6)

    x = jax.random.normal(kx, (B, T, H), dtype=jnp.float32)
    vec = jax.random.normal(kv, (B, H), dtype=jnp.float32)

    # Parameters stored pre-transposed as (in, out), i.e. nn.Linear.weight.T.
    w_mod = 0.05 * jax.random.normal(k1, (H, 2 * H), dtype=jnp.float32)
    b_mod = 0.05 * jax.random.normal(k2, (2 * H,), dtype=jnp.float32)
    w_lin = 0.05 * jax.random.normal(k3, (H, O), dtype=jnp.float32)
    b_lin = 0.05 * jax.random.normal(k4, (O,), dtype=jnp.float32)

    # jit the whole forward so the depad slice fuses with the pallas_call.
    fwd = jax.jit(last_layer_forward)
    out = jax.block_until_ready(fwd(x, vec, w_mod, b_mod, w_lin, b_lin))

    ref = reference_forward(x, vec, w_mod, b_mod, w_lin, b_lin)
    assert out.shape == (B, T, O)
    assert jnp.allclose(out, ref, atol=1e-4, rtol=1e-4), float(
        jnp.max(jnp.abs(out - ref)))

    print("KERNEL_OK")
</pallas_src>

<mosaic_0001>
module attributes {stable_mosaic.version = 11 : i64} {
  func.func @last_layer_kernel(%arg0: i32, %arg1: i32, %arg2: memref<1x8x32xf32, #tpu.memory_space<vmem>>, %arg3: memref<1x32x128xf32, #tpu.memory_space<vmem>>, %arg4: memref<1x1x128xf32, #tpu.memory_space<vmem>>, %arg5: memref<1x8x128xf32, #tpu.memory_space<vmem>>) attributes {dimension_semantics = [#tpu.dimension_semantics<parallel>, #tpu.dimension_semantics<parallel>], iteration_bounds = array<i64: 2, 1>, scalar_prefetch = 0 : i64, scratch_operands = 0 : i64, tpu.core_type = #tpu.core_type<tc>, window_params = [{transform_indices = @transform_0, window_bounds = array<i64: 1, 8, 32>}, {transform_indices = @transform_1, window_bounds = array<i64: 1, 32, 128>}, {transform_indices = @transform_2, window_bounds = array<i64: 1, 1, 128>}, {transform_indices = @transform_3, window_bounds = array<i64: 1, 8, 128>}]} {
    %c0 = arith.constant 0 : index
    %c0_0 = arith.constant 0 : index
    %c0_1 = arith.constant 0 : index
    %0 = vector.load %arg2[%c0, %c0_0, %c0_1] : memref<1x8x32xf32, #tpu.memory_space<vmem>>, vector<1x8x32xf32>
    %1 = vector.shape_cast %0 : vector<1x8x32xf32> to vector<8x32xf32>
    %cst = arith.constant 1.000000e+00 : f32
    %2 = vector.broadcast %cst : f32 to vector<32x1xf32>
    %cst_2 = arith.constant dense<0.000000e+00> : vector<8x1xf32>
    %3 = tpu.matmul %1, %2, %cst_2 {dimension_numbers = #tpu.dot_dimension_numbers<[1], [0], [0], [1], [0, 0, 1, 1], [], []>} : vector<8x32xf32>, vector<32x1xf32>, vector<8x1xf32> -> vector<8x1xf32>
    %cst_3 = arith.constant 3.125000e-02 : f32
    %4 = vector.broadcast %cst_3 : f32 to vector<8x1xf32>
    %5 = arith.mulf %3, %4 : vector<8x1xf32>
    %6 = vector.broadcast %5 : vector<8x1xf32> to vector<8x32xf32>
    %7 = arith.subf %1, %6 : vector<8x32xf32>
    %8 = arith.mulf %7, %7 : vector<8x32xf32>
    %cst_4 = arith.constant dense<0.000000e+00> : vector<8x1xf32>
    %9 = tpu.matmul %8, %2, %cst_4 {dimension_numbers = #tpu.dot_dimension_numbers<[1], [0], [0], [1], [0, 0, 1, 1], [], []>} : vector<8x32xf32>, vector<32x1xf32>, vector<8x1xf32> -> vector<8x1xf32>
    %cst_5 = arith.constant 3.125000e-02 : f32
    %10 = vector.broadcast %cst_5 : f32 to vector<8x1xf32>
    %11 = arith.mulf %9, %10 : vector<8x1xf32>
    %cst_6 = arith.constant 9.99999997E-7 : f32
    %12 = vector.broadcast %cst_6 : f32 to vector<8x1xf32>
    %13 = arith.addf %11, %12 : vector<8x1xf32>
    %14 = math.rsqrt %13 : vector<8x1xf32>
    %15 = vector.broadcast %14 : vector<8x1xf32> to vector<8x32xf32>
    %16 = arith.mulf %7, %15 : vector<8x32xf32>
    %c0_7 = arith.constant 0 : index
    %c0_8 = arith.constant 0 : index
    %c0_9 = arith.constant 0 : index
    %17 = vector.load %arg3[%c0_7, %c0_8, %c0_9] : memref<1x32x128xf32, #tpu.memory_space<vmem>>, vector<1x32x128xf32>
    %18 = vector.shape_cast %17 : vector<1x32x128xf32> to vector<32x128xf32>
    %cst_10 = arith.constant dense<0.000000e+00> : vector<8x128xf32>
    %19 = tpu.matmul %16, %18, %cst_10 {dimension_numbers = #tpu.dot_dimension_numbers<[1], [0], [0], [1], [0, 0, 1, 1], [], []>} : vector<8x32xf32>, vector<32x128xf32>, vector<8x128xf32> -> vector<8x128xf32>
    %c0_11 = arith.constant 0 : index
    %c0_12 = arith.constant 0 : index
    %c0_13 = arith.constant 0 : index
    %20 = vector.load %arg4[%c0_11, %c0_12, %c0_13] : memref<1x1x128xf32, #tpu.memory_space<vmem>>, vector<1x1x128xf32>
    %21 = vector.shape_cast %20 : vector<1x1x128xf32> to vector<1x128xf32>
    %22 = vector.broadcast %21 : vector<1x128xf32> to vector<8x128xf32>
    %23 = arith.addf %19, %22 : vector<8x128xf32>
    %c0_14 = arith.constant 0 : index
    %c0_15 = arith.constant 0 : index
    %c0_16 = arith.constant 0 : index
    %24 = vector.load %arg5[%c0_14, %c0_15, %c0_16] : memref<1x8x128xf32, #tpu.memory_space<vmem>>, vector<1x8x128xf32>
    %25 = vector.shape_cast %24 : vector<1x8x128xf32> to vector<8x128xf32>
    %26 = vector.shape_cast %23 : vector<8x128xf32> to vector<1x8x128xf32>
    tpu.vector_store %arg5[%c0_14, %c0_15, %c0_16], %26 {strides = array<i32>} : memref<1x8x128xf32, #tpu.memory_space<vmem>>, vector<1x8x128xf32>,
    return
  }
  func.func @transform_0(%arg0: i32, %arg1: i32) -> (i32, i32, i32) {
    %c0_i32 = arith.constant 0 : i32
    %c0_i32_0 = arith.constant 0 : i32
    return %arg0, %arg1, %c0_i32 : i32, i32, i32
  }
  func.func @transform_1(%arg0: i32, %arg1: i32) -> (i32, i32, i32) {
    %c0_i32 = arith.constant 0 : i32
    %c0_i32_0 = arith.constant 0 : i32
    %c0_i32_1 = arith.constant 0 : i32
    return %arg0, %c0_i32, %c0_i32_0 : i32, i32, i32
  }
  func.func @transform_2(%arg0: i32, %arg1: i32) -> (i32, i32, i32) {
    %c0_i32 = arith.constant 0 : i32
    %c0_i32_0 = arith.constant 0 : i32
    %c0_i32_1 = arith.constant 0 : i32
    return %arg0, %c0_i32, %c0_i32_0 : i32, i32, i32
  }
  func.func @transform_3(%arg0: i32, %arg1: i32) -> (i32, i32, i32) {
    %c0_i32 = arith.constant 0 : i32
    %c0_i32_0 = arith.constant 0 : i32
    return %arg0, %arg1, %c0_i32 : i32, i32, i32
  }
}

</mosaic_0001>

<llo_original>
// kernel: last_layer_forward.1
$region0: #{last_layer_forward.1}
  #allocation0 [shape = 'u32[]', space=smem, size = 0x4, offset = 0x4, fixed_abs, tag = 'smem constant byte address 0x4 - core index']
  #allocation1 [shape = 'u32[72,128]{1,0:T(1,128)}', space=vmem, size = 0x9000, scoped, tag = 'internal scratch']
  %s0 = inlined_call_operand.vmem [shape: f32[2,8,32], index: 0, kind: input, shape index: {}]
  %s1 = inlined_call_operand.vmem [shape: f32[2,32,128], index: 1, kind: input, shape index: {}]
  %s2 = inlined_call_operand.vmem [shape: f32[2,1,128], index: 2, kind: input, shape index: {}]
  %s3 = inlined_call_operand.hbm [shape: f32[2,8,128], index: 3, kind: output, shape index: {}]
  %s4 = sld [smem:[#allocation0]]
  $region45: #{last_layer_forward.1} parent=0
    _
  %s6 = ssub.s32 1, %s4
  %s7 = scalar_select 0, %s6, %s4
  $region1: #{last_layer_forward.1} parent=0
    #allocation2 [shape = 'u8[8192]{0}', space=vmem, size = 0x2000, scoped, tag = 'output window, operand 0']
    #allocation3 [shape = 's32[2]{0}', space=sflag, size = 0x8, scoped, tag = 'scoped memory for last_layer_forward.1']
    %8 = vsyncpa [#allocation3], 0
    %s9 = scalar_lea.sflag [#allocation3], 1
    %10 = vsyncpa %s9, 0
    loop: start=0, step=1, limit=4
    $region2: #{last_layer_forward.1} parent=1 // loop_pre_header
      _
    $region3: #{last_layer_forward.1} parent=1 // loop_header
      %s12 = sphi 0, %s16
      %p13 = scmp.ge.s32.totalorder %s12, 4
      %s19 = sphi 0, %s31
      %s20 = sphi 0, %s27
      %s21 = sphi 0, %s19
      %s22 = sphi 0, %s20
      %s23 = sphi 0, %s21
      %s24 = sphi 0, %s22
      %s36 = sphi 0, %s38
      %s39 = sphi 0, %s36
      %s40 = sphi 0, %s39
      %s56 = sphi 0, %s40
      %s62 = sphi 0, %s64
      %s65 = sphi 0, %s62
      %s66 = sphi 0, %s65
      %s82 = sphi 0, %s66
      %s88 = sphi 0, %s90
      %s91 = sphi 0, %s88
      %s92 = sphi 0, %s91
      %s108 = sphi 0, %s92
      %s116 = sphi 0, %s118
      %s119 = sphi 0, %s116
      %s120 = sphi 0, %s119
      %s136 = sphi 0, %s120
    $region4: #{last_layer_forward.1} parent=1 // loop_header_branch
      %15 = sbr.rel (%p13) target = $region8
    $region5: #{last_layer_forward.1} parent=1 // loop_body
      %s17 = ssub.s32 %s12, 1
      %s18 = ssub.s32 %s12, 2
      %s25 = sadd.s32 1, %s20
      %p26 = scmp.ge.s32.totalorder %s25, 1
      %s27 = scalar_select %p26, 0, %s25
      %s28 = sadd.s32 1, %s19
      %s29 = scalar_select %p26, %s28, %s19
      %p30 = scmp.ge.s32.totalorder %s29, 2
      %s31 = scalar_select %p30, 0, %s29
      %s32 = ssub.s32 %s19, %s31
      %s33 = ssub.s32 %s20, %s27
      %s34 = sor.u32 %s32, %s33
      %p35 = scmp.eq.s32.totalorder %s34, 0
      %s37 = sadd.s32 %s36, 1
      %s38 = scalar_select %p35, %s36, %s37
      %p41 = pneg %p35
      %p42 = scmp.eq.s32.totalorder %s12, 1
      %p43 = por %p41, %p42
      %p44 = scmp.ne.s32.totalorder %s36, %s39
      %p45 = scmp.eq.s32.totalorder %s12, 0
      %p46 = por %p44, %p45
      %p47 = scmp.ne.s32.totalorder %s36, %s39
      %p48 = scmp.eq.s32.totalorder %s17, 1
      %p49 = por %p47, %p48
      %p50 = scmp.ne.s32.totalorder %s39, %s40
      %p51 = scmp.eq.s32.totalorder %s17, 0
      %p52 = por %p50, %p51
      %p53 = scmp.ne.s32.totalorder %s39, %s40
      %p54 = scmp.eq.s32.totalorder %s18, 1
      %p55 = por %p53, %p54
      %p57 = scmp.ne.s32.totalorder %s40, %s56
      %p58 = scmp.eq.s32.totalorder %s18, 0
      %p59 = por %p57, %p58
      %s60 = ssub.s32 %s19, %s31
      %p61 = scmp.eq.s32.totalorder %s60, 0
      %s63 = sadd.s32 %s62, 1
      %s64 = scalar_select %p61, %s62, %s63
      %p67 = pneg %p61
      %p68 = scmp.eq.s32.totalorder %s12, 1
      %p69 = por %p67, %p68
      %p70 = scmp.ne.s32.totalorder %s62, %s65
      %p71 = scmp.eq.s32.totalorder %s12, 0
      %p72 = por %p70, %p71
      %p73 = scmp.ne.s32.totalorder %s62, %s65
      %p74 = scmp.eq.s32.totalorder %s17, 1
      %p75 = por %p73, %p74
      %p76 = scmp.ne.s32.totalorder %s65, %s66
      %p77 = scmp.eq.s32.totalorder %s17, 0
      %p78 = por %p76, %p77
      %p79 = scmp.ne.s32.totalorder %s65, %s66
      %p80 = scmp.eq.s32.totalorder %s18, 1
      %p81 = por %p79, %p80
      %p83 = scmp.ne.s32.totalorder %s66, %s82
      %p84 = scmp.eq.s32.totalorder %s18, 0
      %p85 = por %p83, %p84
      %s86 = ssub.s32 %s19, %s31
      %p87 = scmp.eq.s32.totalorder %s86, 0
      %s89 = sadd.s32 %s88, 1
      %s90 = scalar_select %p87, %s88, %s89
      %p93 = pneg %p87
      %p94 = scmp.eq.s32.totalorder %s12, 1
      %p95 = por %p93, %p94
      %p96 = scmp.ne.s32.totalorder %s88, %s91
      %p97 = scmp.eq.s32.totalorder %s12, 0
      %p98 = por %p96, %p97
      %p99 = scmp.ne.s32.totalorder %s88, %s91
      %p100 = scmp.eq.s32.totalorder %s17, 1
      %p101 = por %p99, %p100
      %p102 = scmp.ne.s32.totalorder %s91, %s92
      %p103 = scmp.eq.s32.totalorder %s17, 0
      %p104 = por %p102, %p103
      %p105 = scmp.ne.s32.totalorder %s91, %s92
      %p106 = scmp.eq.s32.totalorder %s18, 1
      %p107 = por %p105, %p106
      %p109 = scmp.ne.s32.totalorder %s92, %s108
      %p110 = scmp.eq.s32.totalorder %s18, 0
      %p111 = por %p109, %p110
      %s112 = ssub.s32 %s19, %s31
      %s113 = ssub.s32 %s20, %s27
      %s114 = sor.u32 %s112, %s113
      %p115 = scmp.eq.s32.totalorder %s114, 0
      %s117 = sadd.s32 %s116, 1
      %s118 = scalar_select %p115, %s116, %s117
      %p121 = pneg %p115
      %p122 = scmp.eq.s32.totalorder %s12, 1
      %p123 = por %p121, %p122
      %p124 = scmp.ne.s32.totalorder %s116, %s119
      %p125 = scmp.eq.s32.totalorder %s12, 0
      %p126 = por %p124, %p125
      %p127 = scmp.ne.s32.totalorder %s116, %s119
      %p128 = scmp.eq.s32.totalorder %s17, 1
      %p129 = por %p127, %p128
      %p130 = scmp.ne.s32.totalorder %s119, %s120
      %p131 = scmp.eq.s32.totalorder %s17, 0
      %p132 = por %p130, %p131
      %p133 = scmp.ne.s32.totalorder %s119, %s120
      %p134 = scmp.eq.s32.totalorder %s18, 1
      %p135 = por %p133, %p134
      %p137 = scmp.ne.s32.totalorder %s120, %s136
      %p138 = scmp.eq.s32.totalorder %s18, 0
      %p139 = por %p137, %p138
      %p140 = scmp.le.s32.totalorder 1, %s12
      %p141 = scmp.lt.s32.totalorder %s12, 3
      %p142 = pnand %p140, %p141
      %p143 = pneg %p142
      // Predicated region
      $region9: #{last_layer_forward.1} parent=5 // pred_check
        _
      $region10: #{last_layer_forward.1} parent=5 // pred_check_branch
        %145 = sbr.rel (%p142) target = $region12
      $region11: #{last_layer_forward.1} parent=5 // pred_region
        %s146 = ssub.s32 %s12, 1
      $region12: #{last_layer_forward.1} parent=5 // pred_fallthru
        _
      %p147 = scmp.lt.s32.totalorder %s12, 2
      // Predicated region
      $region13: #{last_layer_forward.1} parent=5 // pred_check
        %p148 = pneg %p147
      $region14: #{last_layer_forward.1} parent=5 // pred_check_branch
        %150 = sbr.rel (%p148) target = $region16
      $region15: #{last_layer_forward.1} parent=5 // pred_region
        // Predicated region
        $region17: #{last_layer_forward.1} parent=15 // pred_check
          %p151 = pneg %p46
        $region18: #{last_layer_forward.1} parent=15 // pred_check_branch
          %153 = sbr.rel (%p151) target = $region20
        $region19: #{last_layer_forward.1} parent=15 // pred_region
          %p154 = scmp.lt.s32.totalorder %s19, 1
          %s155 = scalar_select %p154, %s19, 1
          %p156 = scmp.lt.s32.totalorder %s20, 0
          %s157 = scalar_select %p156, %s20, 0
          %s158 = sadd.s32 %s157, %s155
          %s159 = smul.addr %s158, 8
          %s160 = scalar_lea.vmem %s0, %s159
        $region20: #{last_layer_forward.1} parent=15 // pred_fallthru
          _
        // Predicated region
        $region21: #{last_layer_forward.1} parent=15 // pred_check
          %p161 = pneg %p72
        $region22: #{last_layer_forward.1} parent=15 // pred_check_branch
          %163 = sbr.rel (%p161) target = $region24
        $region23: #{last_layer_forward.1} parent=15 // pred_region
          %p164 = scmp.lt.s32.totalorder %s19, 1
          %s165 = scalar_select %p164, %s19, 1
          %s166 = smul.addr %s165, 4
          %s167 = smul.addr %s166, 8
          %s168 = scalar_lea.vmem %s1, %s167
        $region24: #{last_layer_forward.1} parent=15 // pred_fallthru
          _
        // Predicated region
        $region25: #{last_layer_forward.1} parent=15 // pred_check
          %p169 = pneg %p98
        $region26: #{last_layer_forward.1} parent=15 // pred_check_branch
          %171 = sbr.rel (%p169) target = $region28
        $region27: #{last_layer_forward.1} parent=15 // pred_region
          %p172 = scmp.lt.s32.totalorder %s19, 1
          %s173 = scalar_select %p172, %s19, 1
          %s174 = scalar_lea.vmem %s2, %s173
        $region28: #{last_layer_forward.1} parent=15 // pred_fallthru
          _
      $region16: #{last_layer_forward.1} parent=5 // pred_fallthru
        _
      %p175 = scmp.le.s32.totalorder 1, %s12
      %p176 = scmp.lt.s32.totalorder %s12, 3
      %p177 = pnand %p175, %p176
      %p178 = pneg %p177
      // Predicated region
      $region29: #{last_layer_forward.1} parent=5 // pred_check
        _
      $region30: #{last_layer_forward.1} parent=5 // pred_check_branch
        %180 = sbr.rel (%p177) target = $region32
      $region31: #{last_layer_forward.1} parent=5 // pred_region
        %s181 = ssub.s32 %s12, 1
        %p182 = scmp.lt.s32.totalorder %s21, 1
        %s183 = scalar_select %p182, %s21, 1
        %p184 = scmp.lt.s32.totalorder %s22, 0
        %s185 = scalar_select %p184, %s22, 0
        %s186 = sadd.s32 %s185, %s183
        %s187 = smul.addr %s186, 8
        %s188 = scalar_lea.vmem %s0, %s187
        %p189 = pneg %p52
        %p190 = pneg %p49
        %p191 = scmp.lt.s32.totalorder %s21, 1
        %s192 = scalar_select %p191, %s21, 1
        %s193 = smul.addr %s192, 4
        %s194 = smul.addr %s193, 8
        %s195 = scalar_lea.vmem %s1, %s194
        %p196 = pneg %p78
        %p197 = pneg %p75
        %p198 = scmp.lt.s32.totalorder %s21, 1
        %s199 = scalar_select %p198, %s21, 1
        %s200 = scalar_lea.vmem %s2, %s199
        %p201 = pneg %p104
        %p202 = pneg %p101
        %p203 = pneg %p132
        %p204 = pneg %p129
        %s205 = sand.u32 %s119, 1
        %s206 = scalar_lea.sflag [#allocation3], %s205
        %s207 = sand.u32 %s119, 1
        %s208 = smul.addr %s207, 8
        %s209 = scalar_lea.vmem [#allocation2], %s208
        %p210 = scmp.lt.s32.totalorder %s21, 1
        %s211 = scalar_select %p210, %s21, 1
        %p212 = scmp.lt.s32.totalorder %s22, 0
        %s213 = scalar_select %p212, %s22, 0
        %s214 = sadd.s32 %s213, %s211
        %s215 = smul.addr %s214, 8
        %s216 = scalar_lea.vmem %s0, %s215
        %p217 = scmp.lt.s32.totalorder %s21, 1
        %s218 = scalar_select %p217, %s21, 1
        %s219 = smul.addr %s218, 4
        %s220 = smul.addr %s219, 8
        %s221 = scalar_lea.vmem %s1, %s220
        %p222 = scmp.lt.s32.totalorder %s21, 1
        %s223 = scalar_select %p222, %s21, 1
        %s224 = scalar_lea.vmem %s2, %s223
        %v225 = vld [vmem:[%s216] sm:$0xff]
        %vm226 = vcmask 261120
        %v228 = vsel %vm226, %v225, 0
        %230 = vmatpush.msra.mxu0 0.0
        %231 = vmatpush.msra.mxu0 0.0
        %232 = vmatpush.msra.mxu0 0.0
        %233 = vmatpush.msra.mxu0 0.0
        %234 = vmatpush.msra.mxu0 0.0
        %235 = vmatpush.msra.mxu0 0.0
        %236 = vmatpush.msra.mxu0 0.0
        %237 = vmatpush.msra.mxu0 0.0
        %238 = vmatpush.msra.mxu0 0.0
        %239 = vmatpush.msra.mxu0 0.0
        %240 = vmatpush.msra.mxu0 0.0
        %241 = vmatpush.msra.mxu0 0.0
        %242 = vmatpush.msra.mxu0 1.0
        %243 = vmatpush.msra.mxu0 1.0
        %244 = vmatpush.msra.mxu0 1.0
        %245 = vmatpush.msra.mxu0 1.0
        %246 = vmatmul.f32.gmra.mxu0 %v228
        %v247 = vpop.f32.mrf.mxu0
        %v248 = vadd.f32 0.0, %v247
        %249 = vdwg.mxu0
        %v250 = vmul.f32 %v248, 0.03125
        %252 = vset.pattern.permute.xlu0 0
        %253 = vperm.xlu0 %252, %v250
        %v254 = vpop.permute.xlu0 %253
        %v256 = vsub.f32 %v225, %v254
        %v257 = vmul.f32 %v256, %v256
        %v259 = vsel %vm226, %v257, 0
        %261 = vmatpush.msra.mxu0 0.0
        %262 = vmatpush.msra.mxu0 0.0
        %263 = vmatpush.msra.mxu0 0.0
        %264 = vmatpush.msra.mxu0 0.0
        %265 = vmatpush.msra.mxu0 0.0
        %266 = vmatpush.msra.mxu0 0.0
        %267 = vmatpush.msra.mxu0 0.0
        %268 = vmatpush.msra.mxu0 0.0
        %269 = vmatpush.msra.mxu0 0.0
        %270 = vmatpush.msra.mxu0 0.0
        %271 = vmatpush.msra.mxu0 0.0
        %272 = vmatpush.msra.mxu0 0.0
        %273 = vmatpush.msra.mxu0 1.0
        %274 = vmatpush.msra.mxu0 1.0
        %275 = vmatpush.msra.mxu0 1.0
        %276 = vmatpush.msra.mxu0 1.0
        %277 = vmatmul.f32.gmra.mxu0 %v259
        %v278 = vpop.f32.mrf.mxu0
        %v279 = vadd.f32 0.0, %v278
        %280 = vdwg.mxu0
        %v281 = vmul.f32 %v279, 0.03125
        %v282 = vadd.f32 %v281, 1e-06
        %v283 = vrsqrt.pop %v282
        %v284 = vmul.f32 %v283, %v282
        %v285 = vmul.f32 %v284, %v283
        %v286 = vmul.f32 0.5, %v285
        %v287 = vsub.f32 1.5, %v286
        %v288 = vmul.f32 %v283, %v287
        %vm289 = vweird.f32 %v282
        %vm290 = vweird.f32 %v283
        %vm291 = vmor %vm289, %vm290
        %v292 = vsel %vm291, %v283, %v288
        %294 = vset.pattern.permute.xlu0 0
        %295 = vperm.xlu0 %294, %v292
        %v296 = vpop.permute.xlu0 %295
        %v298 = vmul.f32 %v256, %v296
        %v299 = vld [vmem:[%s221] sm:$0xff]
        %v300 = vld [vmem:[%s221 + $0x8] sm:$0xff]
        %v301 = vld [vmem:[%s221 + $0x10] sm:$0xff]
        %v302 = vld [vmem:[%s221 + $0x18] sm:$0xff]
        %v303 = vld [vmem:[%s224] sm:$0x1]
        %v305 = vperm.slane %v303, 0
        %v308 = vsel %vm226, %v298, 0
        %310 = vmatpush.msra.mxu0 0.0
        %311 = vmatpush.msra.mxu0 0.0
        %312 = vmatpush.msra.mxu0 0.0
        %313 = vmatpush.msra.mxu0 0.0
        %314 = vmatpush.msra.mxu0 0.0
        %315 = vmatpush.msra.mxu0 0.0
        %316 = vmatpush.msra.mxu0 0.0
        %317 = vmatpush.msra.mxu0 0.0
        %318 = vmatpush.msra.mxu0 0.0
        %319 = vmatpush.msra.mxu0 0.0
        %320 = vmatpush.msra.mxu0 0.0
        %321 = vmatpush.msra.mxu0 0.0
        %322 = vmatpush.msra.mxu0 %v302
        %323 = vmatpush.msra.mxu0 %v301
        %324 = vmatpush.msra.mxu0 %v300
        %325 = vmatpush.msra.mxu0 %v299
        %326 = vmatmul.f32.gmra.mxu0 %v308
        %v327 = vpop.f32.mrf.mxu0
        %v328 = vadd.f32 %v305, %v327
        %329 = vdwg.mxu0
        %330 = vst [vmem:[%s209] sm:$0xff] %v328
        %s331 = sand.u32 %s119, 1
        %s332 = scalar_lea.sflag [#allocation3], %s331
        %s333 = sand.u32 %s119, 1
        %s334 = smul.addr %s333, 8
        %s335 = scalar_lea.vmem [#allocation2], %s334
        // Predicated region
        $region33: #{last_layer_forward.1} parent=31 // pred_check
          %p336 = pneg %p129
        $region34: #{last_layer_forward.1} parent=31 // pred_check_branch
          %338 = sbr.rel (%p336) target = $region36
        $region35: #{last_layer_forward.1} parent=31 // pred_region
          %340 = vsyncadd %s332, 0
          %s341 = sadd.s32 %s22, %s21
          %s342 = smul.addr %s341, 8
          %s343 = scalar_lea.hbm %s3, %s342
          %s345 = sshll.u32 %s335, 4
          %s346 = int_to_ptr.vmem [resolvable:$true] %s345
          %s347 = sshll.u32 %s343, 4
          %s348 = int_to_ptr.hbm [resolvable:$true] %s347
          %350 = dma.vmem_to_hbm [thread:$0]  %s346, 128, %s348, %s332
        $region36: #{last_layer_forward.1} parent=31 // pred_fallthru
          _
      $region32: #{last_layer_forward.1} parent=5 // pred_fallthru
        _
      %p351 = scmp.le.s32.totalorder 2, %s12
      // Predicated region
      $region37: #{last_layer_forward.1} parent=5 // pred_check
        %p352 = pneg %p351
      $region38: #{last_layer_forward.1} parent=5 // pred_check_branch
        %354 = sbr.rel (%p352) target = $region40
      $region39: #{last_layer_forward.1} parent=5 // pred_region
        %s355 = ssub.s32 %s12, 2
        // Predicated region
        $region41: #{last_layer_forward.1} parent=39 // pred_check
          %p356 = pneg %p135
        $region42: #{last_layer_forward.1} parent=39 // pred_check_branch
          %358 = sbr.rel (%p356) target = $region44
        $region43: #{last_layer_forward.1} parent=39 // pred_region
          %s359 = sand.u32 %s120, 1
          %s360 = scalar_lea.sflag [#allocation3], %s359
          %s361 = sand.u32 %s120, 1
          %s362 = smul.addr %s361, 8
          %s363 = scalar_lea.vmem [#allocation2], %s362
          %365 = dma.done %s360, 128
        $region44: #{last_layer_forward.1} parent=39 // pred_fallthru
          _
      $region40: #{last_layer_forward.1} parent=5 // pred_fallthru
        _
    $region6: #{last_layer_forward.1} parent=1 // loop_footer
      %s16 = sadd.s32 1, %s12
    $region7: #{last_layer_forward.1} parent=1 // loop_footer_branch
      %11 = sbr.rel target = $region3
    $region8: #{last_layer_forward.1} parent=1 // loop_exit
      _
    %366 = vsyncpa [#allocation3], 1
    %s367 = scalar_lea.sflag [#allocation3], 1
    %368 = vsyncpa %s367, 1

</llo_original>
